<compile_context>
chip_gen: v6e
topology: v6e:2x2x1
jax: 0.10.0
libtpu: 0.0.40
codegen_flags: <defaults>
</compile_context>

<pallas_src>
import jax
import jax.numpy as jnp
from jax import lax
from jax.experimental import pallas as pl
from jax.experimental.pallas import tpu as pltpu


def _round_up(x, m):
    return ((x + m - 1) // m) * m


def _is_two_core_part():
    """True only for TPU generations with 2 TensorCores per chip (v7x)."""
    try:
        kind = jax.devices()[0].device_kind.lower().replace(" ", "")
    except Exception:
        return False
    return ("v7" in kind) or ("tpu7" in kind)


def _pick_tile_groups(m, rows, itemsize, cap_bytes):
    """Number of 128-lane groups per tile (a power of two), sized so one
    physical (sublane-padded) input block stays under cap_bytes."""
    sub = max(8, 32 // max(int(itemsize), 1))        # sublane packing for dtype
    rows_phys = _round_up(max(int(rows), 1), sub)
    bytes_per_group = rows_phys * 128 * int(itemsize)
    cap_groups = max(1, cap_bytes // bytes_per_group)
    cap_p2 = 1
    while cap_p2 * 2 <= cap_groups:
        cap_p2 *= 2
    need = pl.cdiv(int(m), 128)
    need_p2 = 1
    while need_p2 < need:
        need_p2 *= 2
    return min(cap_p2, need_p2)


def _make_kernel(rows, tn, n_tiles, m, needs_mask, assume_binary):
    def _lane_fold(x):
        # (rows, w) -> (rows, 128) by pairwise halving; w is a power-of-two
        # multiple of 128, so every slice is vreg-aligned -> pure VALU adds.
        w = x.shape[-1]
        while w > 128:
            h = w // 2
            x = x[:, :h] + x[:, h:]
            w = h
        return x

    def kernel(p_ref, t_ref, out_ref):
        p = p_ref[...].astype(jnp.float32)
        t = t_ref[...].astype(jnp.float32)

        if needs_mask:
            col0 = (pl.program_id(0) * n_tiles + pl.program_id(1)) * tn
            col = col0 + lax.broadcasted_iota(jnp.int32, (rows, tn), 1)
            valid = col < m
        else:
            valid = None

        def vmask(x):
            return x if valid is None else jnp.where(valid, x, 0.0)

        pos = t > 0.5
        neg = t < 0.5
        if valid is not None:
            pos = jnp.logical_and(pos, valid)
            neg = jnp.logical_and(neg, valid)

        # Dice partial sums (0.5/0.5 class weights folded into the epilogue).
        pt = vmask(p * t)
        pp = vmask(p * p)
        tt = vmask(t * t)

        # Element-wise BCE; PyTorch's F.binary_cross_entropy clamps logs at -100
        # (clamp applied BEFORE the multiply so 0 * (-inf) never appears).
        if assume_binary:
            # Single EUP log per element: log(p) where t==1, log(1-p) where t==0.
            bce = -jnp.maximum(jnp.log1p(jnp.where(pos, p - 1.0, -p)), -100.0)
        else:
            log_p = jnp.maximum(jnp.log(p), -100.0)
            log_1mp = jnp.maximum(jnp.log1p(-p), -100.0)   # accurate as p -> 1
            bce = -(t * log_p + (1.0 - t) * log_1mp)

        bp = jnp.where(pos, bce, 0.0)          # selects (no cast+mul); drops NaN tails
        bn = jnp.where(neg, bce, 0.0)
        cp = jnp.where(pos, 1.0, 0.0)
        cn = jnp.where(neg, 1.0, 0.0)

        stacked = jnp.concatenate(
            [_lane_fold(q) for q in (pt, pp, tt, bp, bn, cp, cn)], axis=-1)

        is_first = pl.program_id(1) == 0

        @pl.when(is_first)
        def _():
            out_ref[...] = stacked

        @pl.when(jnp.logical_not(is_first))
        def _():
            out_ref[...] = out_ref[...] + stacked

    return kernel


def weighted_dice_bce_unsup(inputs, targets, lv_loss, dice_weight=1.0,
                            bce_weight=1.0, assume_binary_targets=False):
    """inputs/targets: (B, ...) probabilities / labels; lv_loss: scalar."""
    assert inputs.shape == targets.shape
    B = inputs.shape[0]
    N = 1
    for d in inputs.shape[1:]:
        N *= d

    # Row split: fill the sublane axis (rows % 8 == 0) whenever N allows it.
    R = 1
    for r in (1, 2, 4, 8):
        if N % r == 0 and (B * r) % 8 == 0:
            R = r
            break
    rows = B * R
    m = N // R

    # Contiguous view; no dtype cast (bf16 inputs would stream natively).
    p = inputs.reshape(rows, m)
    t = targets.reshape(rows, m)

    is_v7 = _is_two_core_part()
    itemsize = max(jnp.dtype(inputs.dtype).itemsize,
                   jnp.dtype(targets.dtype).itemsize)
    cap_bytes = (2 << 20) if is_v7 else (4 << 20)   # per input block (physical)
    tn = 128 * _pick_tile_groups(m, rows, itemsize, cap_bytes)

    total_blocks = pl.cdiv(m, tn)
    n_splits = 2 if (is_v7 and total_blocks >= 2) else 1
    n_tiles = pl.cdiv(total_blocks, n_splits)
    needs_mask = (n_splits * n_tiles * tn) != m

    last_block = total_blocks - 1
    # Clamp fully-out-of-range steps onto the last valid block; their logical
    # column offsets are >= m, so the in-kernel mask zeroes their contribution.
    feat_map = lambda c, k: (0, jnp.minimum(c * n_tiles + k, last_block))
    out_map = lambda c, k: (c, 0, 0)

    kernel = _make_kernel(rows, tn, n_tiles, m, needs_mask, assume_binary_targets)

    partials = pl.pallas_call(
        kernel,
        out_shape=jax.ShapeDtypeStruct((n_splits, rows, 7 * 128), jnp.float32),
        grid_spec=pltpu.PrefetchScalarGridSpec(
            num_scalar_prefetch=0,
            grid=(n_splits, n_tiles),
            in_specs=[
                pl.BlockSpec((rows, tn), feat_map),   # inputs tile
                pl.BlockSpec((rows, tn), feat_map),   # targets tile
            ],
            out_specs=pl.BlockSpec((None, rows, 7 * 128), out_map),
        ),
        compiler_params=pltpu.CompilerParams(
            dimension_semantics=("parallel", "arbitrary"),
            vmem_limit_bytes=32 * 1024 * 1024,
        ),
    )(p, t)

    # --- tiny epilogue: combine per-core, per-lane, per-sub-row partials ---
    acc = jnp.sum(partials, axis=0)                          # (rows, 7*128)
    per_row = jnp.sum(acc.reshape(rows, 7, 128), axis=-1)    # (rows, 7)
    per_b = jnp.sum(per_row.reshape(B, R, 7), axis=1)        # (B, 7)
    s_pt, s_pp, s_tt, s_bp, s_bn, s_cp, s_cn = [per_b[:, i] for i in range(7)]

    smooth = 1e-5
    # WeightedDiceLoss(weights=[0.5, 0.5]): w == 0.5 -> wp = 0.5 p, wt = 0.5 t.
    dice = 1.0 - (0.5 * s_pt + smooth) / (0.25 * (s_pp + s_tt) + smooth)
    dice_loss = jnp.mean(dice)

    # WeightedBCE(weights=[0.5, 0.5]) over the globally flattened tensors.
    pos_w = jnp.sum(s_cp) + 1e-12
    neg_w = jnp.sum(s_cn) + 1e-12
    bce_loss = 0.5 * jnp.sum(s_bp) / pos_w + 0.5 * jnp.sum(s_bn) / neg_w

    lv = jnp.asarray(lv_loss, jnp.float32)
    return dice_weight * dice_loss + bce_weight * bce_loss + 0.1 * lv


def _reference(inputs, targets, lv_loss, dice_weight=1.0, bce_weight=1.0):
    """Pure-JAX reference mirroring the PyTorch module."""
    B = inputs.shape[0]
    p = inputs.reshape(B, -1).astype(jnp.float32)
    t = targets.reshape(B, -1).astype(jnp.float32)
    wp, wt = 0.5 * p, 0.5 * t
    smooth = 1e-5
    inter = jnp.sum(wp * wt, -1)
    union = jnp.sum(wp * wp, -1) + jnp.sum(wt * wt, -1)
    dice = jnp.mean(1.0 - (2.0 * inter + smooth) / (union + smooth))
    log_p = jnp.maximum(jnp.log(p), -100.0)
    log_1mp = jnp.maximum(jnp.log1p(-p), -100.0)
    bce_elem = -(t * log_p + (1.0 - t) * log_1mp)
    pos = (t > 0.5).astype(jnp.float32)
    neg = (t < 0.5).astype(jnp.float32)
    bce = (0.5 * jnp.sum(pos * bce_elem) / (jnp.sum(pos) + 1e-12)
           + 0.5 * jnp.sum(neg * bce_elem) / (jnp.sum(neg) + 1e-12))
    return dice_weight * dice + bce_weight * bce + 0.1 * jnp.asarray(lv_loss, jnp.float32)


if __name__ == "__main__":
    key = jax.random.PRNGKey(0)
    k1, k2, k3 = jax.random.split(key, 3)

    B, C, H, W = 2, 4, 16, 16
    # inputs are probabilities in (0, 1); targets are binary {0, 1}
    inputs = jax.random.uniform(k1, (B, C, H, W), jnp.float32,
                                minval=0.01, maxval=0.99)
    targets = jax.random.bernoulli(k2, 0.3, (B, C, H, W)).astype(jnp.float32)
    lv_loss = jax.random.uniform(k3, (), jnp.float32)

    # Exact path (matches PyTorch semantics for soft targets too).
    loss = weighted_dice_bce_unsup(inputs, targets, lv_loss)
    jax.block_until_ready(loss)
    ref = _reference(inputs, targets, lv_loss)
    assert jnp.abs(loss - ref) < 1e-4, (float(loss), float(ref))

    # Binary-targets fast path (single log per element) — exact for {0,1} labels.
    loss_bin = weighted_dice_bce_unsup(inputs, targets, lv_loss,
                                       assume_binary_targets=True)
    jax.block_until_ready(loss_bin)
    assert jnp.abs(loss_bin - ref) < 1e-4, (float(loss_bin), float(ref))

    print("KERNEL_OK")
</pallas_src>

<mosaic_0001>
module attributes {stable_mosaic.version = 11 : i64} {
  func.func @kernel(%arg0: i32, %arg1: i32, %arg2: memref<8x256xf32, #tpu.memory_space<vmem>>, %arg3: memref<8x256xf32, #tpu.memory_space<vmem>>, %arg4: memref<1x8x896xf32, #tpu.memory_space<vmem>>) attributes {dimension_semantics = [#tpu.dimension_semantics<parallel>, #tpu.dimension_semantics<arbitrary>], iteration_bounds = array<i64: 1, 1>, scalar_prefetch = 0 : i64, scratch_operands = 0 : i64, tpu.core_type = #tpu.core_type<tc>, window_params = [{transform_indices = @transform_0, window_bounds = array<i64: 8, 256>}, {transform_indices = @transform_1, window_bounds = array<i64: 8, 256>}, {transform_indices = @transform_2, window_bounds = array<i64: 1, 8, 896>}]} {
    %c0 = arith.constant 0 : index
    %c0_0 = arith.constant 0 : index
    %0 = vector.load %arg2[%c0, %c0_0] : memref<8x256xf32, #tpu.memory_space<vmem>>, vector<8x256xf32>
    %c0_1 = arith.constant 0 : index
    %c0_2 = arith.constant 0 : index
    %1 = vector.load %arg3[%c0_1, %c0_2] : memref<8x256xf32, #tpu.memory_space<vmem>>, vector<8x256xf32>
    %cst = arith.constant 5.000000e-01 : f32
    %2 = vector.broadcast %cst : f32 to vector<8x256xf32>
    %3 = arith.cmpf ogt, %1, %2 : vector<8x256xf32>
    %cst_3 = arith.constant 5.000000e-01 : f32
    %4 = vector.broadcast %cst_3 : f32 to vector<8x256xf32>
    %5 = arith.cmpf olt, %1, %4 : vector<8x256xf32>
    %6 = arith.mulf %0, %1 : vector<8x256xf32>
    %7 = arith.mulf %0, %0 : vector<8x256xf32>
    %8 = arith.mulf %1, %1 : vector<8x256xf32>
    %9 = math.log %0 : vector<8x256xf32>
    %cst_4 = arith.constant -1.000000e+02 : f32
    %10 = vector.broadcast %cst_4 : f32 to vector<8x256xf32>
    %11 = arith.maximumf %9, %10 : vector<8x256xf32>
    %cst_5 = arith.constant 0.000000e+00 : f32
    %12 = vector.broadcast %cst_5 : f32 to vector<8x256xf32>
    %13 = arith.subf %12, %0 : vector<8x256xf32>
    %14 = math.log1p %13 : vector<8x256xf32>
    %cst_6 = arith.constant -1.000000e+02 : f32
    %15 = vector.broadcast %cst_6 : f32 to vector<8x256xf32>
    %16 = arith.maximumf %14, %15 : vector<8x256xf32>
    %17 = arith.mulf %1, %11 : vector<8x256xf32>
    %cst_7 = arith.constant 1.000000e+00 : f32
    %18 = vector.broadcast %cst_7 : f32 to vector<8x256xf32>
    %19 = arith.subf %18, %1 : vector<8x256xf32>
    %20 = arith.mulf %19, %16 : vector<8x256xf32>
    %21 = arith.addf %17, %20 : vector<8x256xf32>
    %cst_8 = arith.constant 0.000000e+00 : f32
    %22 = vector.broadcast %cst_8 : f32 to vector<8x256xf32>
    %23 = arith.subf %22, %21 : vector<8x256xf32>
    %cst_9 = arith.constant 0.000000e+00 : f32
    %24 = vector.broadcast %cst_9 : f32 to vector<8x256xf32>
    %25 = arith.select %3, %23, %24 : vector<8x256xi1>, vector<8x256xf32>
    %cst_10 = arith.constant 0.000000e+00 : f32
    %26 = vector.broadcast %cst_10 : f32 to vector<8x256xf32>
    %27 = arith.select %5, %23, %26 : vector<8x256xi1>, vector<8x256xf32>
    %cst_11 = arith.constant 1.000000e+00 : f32
    %cst_12 = arith.constant 0.000000e+00 : f32
    %28 = vector.broadcast %cst_11 : f32 to vector<8x256xf32>
    %29 = vector.broadcast %cst_12 : f32 to vector<8x256xf32>
    %30 = arith.select %3, %28, %29 : vector<8x256xi1>, vector<8x256xf32>
    %cst_13 = arith.constant 1.000000e+00 : f32
    %cst_14 = arith.constant 0.000000e+00 : f32
    %31 = vector.broadcast %cst_13 : f32 to vector<8x256xf32>
    %32 = vector.broadcast %cst_14 : f32 to vector<8x256xf32>
    %33 = arith.select %5, %31, %32 : vector<8x256xi1>, vector<8x256xf32>
    %34 = vector.extract_strided_slice %6 {offsets = [0, 0], sizes = [8, 128], strides = [1, 1]} : vector<8x256xf32> to vector<8x128xf32>
    %35 = vector.extract_strided_slice %6 {offsets = [0, 128], sizes = [8, 128], strides = [1, 1]} : vector<8x256xf32> to vector<8x128xf32>
    %36 = arith.addf %34, %35 : vector<8x128xf32>
    %37 = vector.extract_strided_slice %7 {offsets = [0, 0], sizes = [8, 128], strides = [1, 1]} : vector<8x256xf32> to vector<8x128xf32>
    %38 = vector.extract_strided_slice %7 {offsets = [0, 128], sizes = [8, 128], strides = [1, 1]} : vector<8x256xf32> to vector<8x128xf32>
    %39 = arith.addf %37, %38 : vector<8x128xf32>
    %40 = vector.extract_strided_slice %8 {offsets = [0, 0], sizes = [8, 128], strides = [1, 1]} : vector<8x256xf32> to vector<8x128xf32>
    %41 = vector.extract_strided_slice %8 {offsets = [0, 128], sizes = [8, 128], strides = [1, 1]} : vector<8x256xf32> to vector<8x128xf32>
    %42 = arith.addf %40, %41 : vector<8x128xf32>
    %43 = vector.extract_strided_slice %25 {offsets = [0, 0], sizes = [8, 128], strides = [1, 1]} : vector<8x256xf32> to vector<8x128xf32>
    %44 = vector.extract_strided_slice %25 {offsets = [0, 128], sizes = [8, 128], strides = [1, 1]} : vector<8x256xf32> to vector<8x128xf32>
    %45 = arith.addf %43, %44 : vector<8x128xf32>
    %46 = vector.extract_strided_slice %27 {offsets = [0, 0], sizes = [8, 128], strides = [1, 1]} : vector<8x256xf32> to vector<8x128xf32>
    %47 = vector.extract_strided_slice %27 {offsets = [0, 128], sizes = [8, 128], strides = [1, 1]} : vector<8x256xf32> to vector<8x128xf32>
    %48 = arith.addf %46, %47 : vector<8x128xf32>
    %49 = vector.extract_strided_slice %30 {offsets = [0, 0], sizes = [8, 128], strides = [1, 1]} : vector<8x256xf32> to vector<8x128xf32>
    %50 = vector.extract_strided_slice %30 {offsets = [0, 128], sizes = [8, 128], strides = [1, 1]} : vector<8x256xf32> to vector<8x128xf32>
    %51 = arith.addf %49, %50 : vector<8x128xf32>
    %52 = vector.extract_strided_slice %33 {offsets = [0, 0], sizes = [8, 128], strides = [1, 1]} : vector<8x256xf32> to vector<8x128xf32>
    %53 = vector.extract_strided_slice %33 {offsets = [0, 128], sizes = [8, 128], strides = [1, 1]} : vector<8x256xf32> to vector<8x128xf32>
    %54 = arith.addf %52, %53 : vector<8x128xf32>
    %55 = tpu.concatenate %36, %39, %42, %45, %48, %51, %54 in 1 : vector<8x128xf32>, vector<8x128xf32>, vector<8x128xf32>, vector<8x128xf32>, vector<8x128xf32>, vector<8x128xf32>, vector<8x128xf32> -> vector<8x896xf32>
    %c0_i32 = arith.constant 0 : i32
    %56 = arith.cmpi eq, %arg1, %c0_i32 : i32
    %57 = arith.extui %56 : i1 to i32
    %c0_i32_15 = arith.constant 0 : i32
    %58 = arith.cmpi ne, %57, %c0_i32_15 : i32
    scf.if %58 {
      %c0_17 = arith.constant 0 : index
      %c0_18 = arith.constant 0 : index
      %c0_19 = arith.constant 0 : index
      %62 = vector.load %arg4[%c0_17, %c0_18, %c0_19] : memref<1x8x896xf32, #tpu.memory_space<vmem>>, vector<1x8x896xf32>
      %63 = vector.shape_cast %62 : vector<1x8x896xf32> to vector<8x896xf32>
      %64 = vector.shape_cast %55 : vector<8x896xf32> to vector<1x8x896xf32>
      tpu.vector_store %arg4[%c0_17, %c0_18, %c0_19], %64 {strides = array<i32>} : memref<1x8x896xf32, #tpu.memory_space<vmem>>, vector<1x8x896xf32>,
    } else {
    }
    %true = arith.constant true
    %59 = arith.xori %56, %true : i1
    %60 = arith.extui %59 : i1 to i32
    %c0_i32_16 = arith.constant 0 : i32
    %61 = arith.cmpi ne, %60, %c0_i32_16 : i32
    scf.if %61 {
      %c0_17 = arith.constant 0 : index
      %c0_18 = arith.constant 0 : index
      %c0_19 = arith.constant 0 : index
      %62 = vector.load %arg4[%c0_17, %c0_18, %c0_19] : memref<1x8x896xf32, #tpu.memory_space<vmem>>, vector<1x8x896xf32>
      %63 = vector.shape_cast %62 : vector<1x8x896xf32> to vector<8x896xf32>
      %64 = arith.addf %63, %55 : vector<8x896xf32>
      %c0_20 = arith.constant 0 : index
      %c0_21 = arith.constant 0 : index
      %c0_22 = arith.constant 0 : index
      %65 = vector.load %arg4[%c0_20, %c0_21, %c0_22] : memref<1x8x896xf32, #tpu.memory_space<vmem>>, vector<1x8x896xf32>
      %66 = vector.shape_cast %65 : vector<1x8x896xf32> to vector<8x896xf32>
      %67 = vector.shape_cast %64 : vector<8x896xf32> to vector<1x8x896xf32>
      tpu.vector_store %arg4[%c0_20, %c0_21, %c0_22], %67 {strides = array<i32>} : memref<1x8x896xf32, #tpu.memory_space<vmem>>, vector<1x8x896xf32>,
    } else {
    }
    return
  }
  func.func @transform_0(%arg0: i32, %arg1: i32) -> (i32, i32) {
    %c1_i32 = arith.constant 1 : i32
    %0 = arith.muli %arg0, %c1_i32 : i32
    %1 = arith.addi %0, %arg1 : i32
    %c0_i32 = arith.constant 0 : i32
    %2 = arith.minsi %1, %c0_i32 : i32
    %c0_i32_0 = arith.constant 0 : i32
    %c0_i32_1 = arith.constant 0 : i32
    return %c0_i32_0, %2 : i32, i32
  }
  func.func @transform_1(%arg0: i32, %arg1: i32) -> (i32, i32) {
    %c1_i32 = arith.constant 1 : i32
    %0 = arith.muli %arg0, %c1_i32 : i32
    %1 = arith.addi %0, %arg1 : i32
    %c0_i32 = arith.constant 0 : i32
    %2 = arith.minsi %1, %c0_i32 : i32
    %c0_i32_0 = arith.constant 0 : i32
    %c0_i32_1 = arith.constant 0 : i32
    return %c0_i32_0, %2 : i32, i32
  }
  func.func @transform_2(%arg0: i32, %arg1: i32) -> (i32, i32, i32) {
    %c0_i32 = arith.constant 0 : i32
    %c0_i32_0 = arith.constant 0 : i32
    %c0_i32_1 = arith.constant 0 : i32
    return %arg0, %c0_i32, %c0_i32_0 : i32, i32, i32
  }
}

</mosaic_0001>

<llo_original>
// kernel: tpu_custom_call.1
$region0: #{tpu_custom_call.1}
  #allocation0 [shape = 'u32[]', space=smem, size = 0x4, offset = 0x4, fixed_abs, tag = 'smem constant byte address 0x4 - core index']
  #allocation1 [shape = 'u32[144,128]{1,0:T(1,128)}', space=vmem, size = 0x12000, scoped, tag = 'internal scratch']
  %s0 = inlined_call_operand.hbm [shape: f32[8,256], index: 0, kind: input, shape index: {}]
  %s1 = inlined_call_operand.hbm [shape: f32[8,256], index: 1, kind: input, shape index: {}]
  %s2 = inlined_call_operand.hbm [shape: f32[1,8,896], index: 2, kind: output, shape index: {}]
  %s3 = sld [smem:[#allocation0]]
  $region34: #{tpu_custom_call.1} parent=0
    _
  %s5 = ssub.s32 1, %s3
  %s6 = scalar_select 0, %s5, %s3
  $region1: #{tpu_custom_call.1} parent=0
    #allocation2 [shape = 'u8[8192]{0}', space=vmem, size = 0x2000, scoped, tag = 'input window, operand 0, single buffered']
    #allocation3 [shape = 's32[1]{0}', space=sflag, size = 0x4, scoped, tag = 'scoped memory for tpu_custom_call.1']
    #allocation4 [shape = 's32[1]{0}', space=sflag, size = 0x4, scoped, tag = 'scoped memory for tpu_custom_call.1']
    #allocation5 [shape = 'u8[8192]{0}', space=vmem, size = 0x2000, scoped, tag = 'input window, operand 1, single buffered']
    #allocation6 [shape = 's32[1]{0}', space=sflag, size = 0x4, scoped, tag = 'scoped memory for tpu_custom_call.1']
    #allocation7 [shape = 'u8[28672]{0}', space=vmem, size = 0x7000, scoped, tag = 'output window, operand 0, single buffered']
    %7 = vsyncpa [#allocation3], 0
    %8 = vsyncpa [#allocation6], 0
    %9 = vsyncpa [#allocation4], 0
    // Predicated region
    $region2: #{tpu_custom_call.1} parent=1 // pred_check
      _
    $region3: #{tpu_custom_call.1} parent=1 // pred_check_branch
      %11 = sbr.rel (0) target = $region5
    $region4: #{tpu_custom_call.1} parent=1 // pred_region
      %s12 = sadd.s32 0, 0
      %p13 = scmp.lt.s32.totalorder %s12, 0
      %s14 = scalar_select %p13, %s12, 0
      %s15 = smul.u32 2, %s14
      %s17 = ssub.s32 256, 256
      %18 = vsyncadd [#allocation3], %s17
      %s19 = smul.addr %s15, 128
      %s20 = scalar_lea.hbm %s0, %s19
      %s22 = sshll.u32 [#allocation2], 4
      %s23 = int_to_ptr.vmem [resolvable:$true] %s22
      %25 = dma.hbm_to_vmem [thread:$0]  %s20, 256, %s23, [#allocation3]
    $region5: #{tpu_custom_call.1} parent=1 // pred_fallthru
      _
    // Predicated region
    $region6: #{tpu_custom_call.1} parent=1 // pred_check
      _
    $region7: #{tpu_custom_call.1} parent=1 // pred_check_branch
      %27 = sbr.rel (0) target = $region9
    $region8: #{tpu_custom_call.1} parent=1 // pred_region
      %s28 = sadd.s32 0, 0
      %p29 = scmp.lt.s32.totalorder %s28, 0
      %s30 = scalar_select %p29, %s28, 0
      %s31 = smul.u32 2, %s30
      %s33 = ssub.s32 256, 256
      %34 = vsyncadd [#allocation6], %s33
      %s35 = smul.addr %s31, 128
      %s36 = scalar_lea.hbm %s1, %s35
      %s38 = sshll.u32 [#allocation5], 4
      %s39 = int_to_ptr.vmem [resolvable:$true] %s38
      %41 = dma.hbm_to_vmem [thread:$0]  %s36, 256, %s39, [#allocation6]
    $region9: #{tpu_custom_call.1} parent=1 // pred_fallthru
      _
    // Predicated region
    $region10: #{tpu_custom_call.1} parent=1 // pred_check
      _
    $region11: #{tpu_custom_call.1} parent=1 // pred_check_branch
      %43 = sbr.rel (0) target = $region13
    $region12: #{tpu_custom_call.1} parent=1 // pred_region
      %44 = dma.done [#allocation3], 256
    $region13: #{tpu_custom_call.1} parent=1 // pred_fallthru
      _
    // Predicated region
    $region14: #{tpu_custom_call.1} parent=1 // pred_check
      _
    $region15: #{tpu_custom_call.1} parent=1 // pred_check_branch
      %46 = sbr.rel (0) target = $region17
    $region16: #{tpu_custom_call.1} parent=1 // pred_region
      %47 = dma.done [#allocation6], 256
    $region17: #{tpu_custom_call.1} parent=1 // pred_fallthru
      _
    %s48 = sadd.s32 0, 0
    %p49 = scmp.lt.s32.totalorder %s48, 0
    %s50 = scalar_select %p49, %s48, 0
    %s51 = smul.u32 2, %s50
    %s52 = sadd.s32 0, 0
    %p53 = scmp.lt.s32.totalorder %s52, 0
    %s54 = scalar_select %p53, %s52, 0
    %s55 = smul.u32 2, %s54
    %v56 = vld [vmem:[#allocation2] sm:$0xff]
    %v57 = vld [vmem:[#allocation2 + $0x8] sm:$0xff]
    %v58 = vld [vmem:[#allocation5] sm:$0xff]
    %v59 = vld [vmem:[#allocation5 + $0x8] sm:$0xff]
    %vm60 = vcmp.gt.f32.partialorder %v58, 0.5
    %vm61 = vcmp.gt.f32.partialorder %v59, 0.5
    %vm62 = vcmp.lt.f32.partialorder %v58, 0.5
    %vm63 = vcmp.lt.f32.partialorder %v59, 0.5
    %v64 = vmul.f32 %v56, %v58
    %v65 = vmul.f32 %v57, %v59
    %v66 = vmul.f32 %v56, %v56
    %v67 = vmul.f32 %v57, %v57
    %v68 = vmul.f32 %v58, %v58
    %v69 = vmul.f32 %v59, %v59
    %v70 = vlog2.pop %v56
    %v71 = vmul.f32 %v70, 0.6931472
    %v72 = vlog2.pop %v57
    %v73 = vmul.f32 %v72, 0.6931472
    %v74 = vmax.f32 %v71, -100.0
    %v75 = vmax.f32 %v73, -100.0
    %v76 = vsub.f32 0.0, %v56
    %v77 = vsub.f32 0.0, %v57
    %v78 = vadd.f32 %v76, 1.0
    %v79 = vlog2.pop %v78
    %v80 = vmul.f32 %v79, 0.6931472
    %v81 = vmul.f32 -0.5, %v76
    %v82 = vadd.f32 %v81, 1.0
    %v83 = vmul.f32 %v82, %v76
    %v84 = vand.u32 2147483647, %v76
    %vm85 = vcmp.lt.f32.partialorder %v84, 0.0004427343
    %v86 = vsel %vm85, %v83, %v80
    %v87 = vadd.f32 %v77, 1.0
    %v88 = vlog2.pop %v87
    %v89 = vmul.f32 %v88, 0.6931472
    %v90 = vmul.f32 -0.5, %v77
    %v91 = vadd.f32 %v90, 1.0
    %v92 = vmul.f32 %v91, %v77
    %v93 = vand.u32 2147483647, %v77
    %vm94 = vcmp.lt.f32.partialorder %v93, 0.0004427343
    %v95 = vsel %vm94, %v92, %v89
    %v96 = vmax.f32 %v86, -100.0
    %v97 = vmax.f32 %v95, -100.0
    %v98 = vmul.f32 %v58, %v74
    %v99 = vmul.f32 %v59, %v75
    %v100 = vsub.f32 1.0, %v58
    %v101 = vsub.f32 1.0, %v59
    %v102 = vmul.f32 %v100, %v96
    %v103 = vmul.f32 %v101, %v97
    %v104 = vadd.f32 %v98, %v102
    %v105 = vadd.f32 %v99, %v103
    %v106 = vsub.f32 0.0, %v104
    %v107 = vsub.f32 0.0, %v105
    %v108 = vsel %vm60, %v106, 0.0
    %v109 = vsel %vm61, %v107, 0.0
    %v110 = vsel %vm62, %v106, 0.0
    %v111 = vsel %vm63, %v107, 0.0
    %v112 = vsel %vm60, 1.0, 0.0
    %v113 = vsel %vm61, 1.0, 0.0
    %v114 = vsel %vm62, 1.0, 0.0
    %v115 = vsel %vm63, 1.0, 0.0
    %v116 = vadd.f32 %v64, %v65
    %v117 = vadd.f32 %v66, %v67
    %v118 = vadd.f32 %v68, %v69
    %v119 = vadd.f32 %v108, %v109
    %v120 = vadd.f32 %v110, %v111
    %v121 = vadd.f32 %v112, %v113
    %v122 = vadd.f32 %v114, %v115
    %p123 = scmp.eq.s32.totalorder 0, 0
    // Predicated region
    $region18: #{tpu_custom_call.1} parent=1 // pred_check
      %p124 = pneg %p123
    $region19: #{tpu_custom_call.1} parent=1 // pred_check_branch
      %126 = sbr.rel (%p124) target = $region21
    $region20: #{tpu_custom_call.1} parent=1 // pred_region
      %127 = vst [vmem:[#allocation7] sm:$0xff] %v116
      %128 = vst [vmem:[#allocation7 + $0x8] sm:$0xff] %v117
      %129 = vst [vmem:[#allocation7 + $0x10] sm:$0xff] %v118
      %130 = vst [vmem:[#allocation7 + $0x18] sm:$0xff] %v119
      %131 = vst [vmem:[#allocation7 + $0x20] sm:$0xff] %v120
      %132 = vst [vmem:[#allocation7 + $0x28] sm:$0xff] %v121
      %133 = vst [vmem:[#allocation7 + $0x30] sm:$0xff] %v122
    $region21: #{tpu_custom_call.1} parent=1 // pred_fallthru
      _
    %p134 = scmp.ne.s32.totalorder 0, 0
    // Predicated region
    $region22: #{tpu_custom_call.1} parent=1 // pred_check
      %p135 = pneg %p134
    $region23: #{tpu_custom_call.1} parent=1 // pred_check_branch
      %137 = sbr.rel (%p135) target = $region25
    $region24: #{tpu_custom_call.1} parent=1 // pred_region
      %v138 = vld [vmem:[#allocation7] sm:$0xff]
      %v139 = vld [vmem:[#allocation7 + $0x8] sm:$0xff]
      %v140 = vld [vmem:[#allocation7 + $0x10] sm:$0xff]
      %v141 = vld [vmem:[#allocation7 + $0x18] sm:$0xff]
      %v142 = vld [vmem:[#allocation7 + $0x20] sm:$0xff]
      %v143 = vld [vmem:[#allocation7 + $0x28] sm:$0xff]
      %v144 = vld [vmem:[#allocation7 + $0x30] sm:$0xff]
      %v145 = vadd.f32 %v138, %v116
      %v146 = vadd.f32 %v139, %v117
      %v147 = vadd.f32 %v140, %v118
      %v148 = vadd.f32 %v141, %v119
      %v149 = vadd.f32 %v142, %v120
      %v150 = vadd.f32 %v143, %v121
      %v151 = vadd.f32 %v144, %v122
      %152 = vst [vmem:[#allocation7] sm:$0xff] %v145
      %153 = vst [vmem:[#allocation7 + $0x8] sm:$0xff] %v146
      %154 = vst [vmem:[#allocation7 + $0x10] sm:$0xff] %v147
      %155 = vst [vmem:[#allocation7 + $0x18] sm:$0xff] %v148
      %156 = vst [vmem:[#allocation7 + $0x20] sm:$0xff] %v149
      %157 = vst [vmem:[#allocation7 + $0x28] sm:$0xff] %v150
      %158 = vst [vmem:[#allocation7 + $0x30] sm:$0xff] %v151
    $region25: #{tpu_custom_call.1} parent=1 // pred_fallthru
      _
    // Predicated region
    $region26: #{tpu_custom_call.1} parent=1 // pred_check
      _
    $region27: #{tpu_custom_call.1} parent=1 // pred_check_branch
      %160 = sbr.rel (0) target = $region29
    $region28: #{tpu_custom_call.1} parent=1 // pred_region
      %s162 = ssub.s32 896, 896
      %163 = vsyncadd [#allocation4], %s162
      %s165 = sshll.u32 [#allocation7], 4
      %s166 = int_to_ptr.vmem [resolvable:$true] %s165
      %168 = dma.vmem_to_hbm [thread:$0]  %s166, 896, %s2, [#allocation4]
    $region29: #{tpu_custom_call.1} parent=1 // pred_fallthru
      _
    // Predicated region
    $region30: #{tpu_custom_call.1} parent=1 // pred_check
      _
    $region31: #{tpu_custom_call.1} parent=1 // pred_check_branch
      %170 = sbr.rel (0) target = $region33
    $region32: #{tpu_custom_call.1} parent=1 // pred_region
      %171 = dma.done [#allocation4], 896
    $region33: #{tpu_custom_call.1} parent=1 // pred_fallthru
      _
    %172 = vsyncpa [#allocation3], 1
    %173 = vsyncpa [#allocation6], 1
    %174 = vsyncpa [#allocation4], 1

</llo_original>
